<compile_context>
chip_gen: v7x
topology: tpu7x:2x2x1
jax: 0.10.0
libtpu: 0.0.40
codegen_flags: <defaults>
</compile_context>

<pallas_src>
import functools

import jax
import jax.numpy as jnp
import numpy as np
from jax import lax
from jax.experimental import pallas as pl
from jax.experimental.pallas import tpu as pltpu


# ----------------------------------------------------------------------------
# Kernel.  x_ref block: (1, D, T)   (D = maxdisp/divisor on sublanes,
#                                    T = lane-dense spatial tile, mult. of 128)
# Outputs: out_ref (1, 1, T) and, when ifent, ent_ref (1, 1, T).
# ----------------------------------------------------------------------------
def _dispreg_kernel(x_ref, *out_refs, divisor, fuse_softmax):
    x = x_ref[0].astype(jnp.float32)                           # (D, T)
    if fuse_softmax:
        # softmax over the disparity (sublane) axis, in VMEM.
        m = jnp.max(x, axis=0, keepdims=True)
        e = jnp.exp(x - m)
        x = e / jnp.sum(e, axis=0, keepdims=True)
    disp = lax.broadcasted_iota(jnp.int32, x.shape, 0).astype(jnp.float32)
    out_refs[0][0] = jnp.sum(x * disp, axis=0, keepdims=True) * divisor
    if len(out_refs) == 2:
        xe = x + 1e-12
        out_refs[1][0] = jnp.sum(-xe * jnp.log(xe), axis=0, keepdims=True)


# ----------------------------------------------------------------------------
# Spatial tile picker: largest multiple of 128 such that the double-buffered
# input block plus (double-buffered) output blocks stay under `budget` bytes.
# ----------------------------------------------------------------------------
def _pick_spatial_tile(hw_pad128, d, in_itemsize, n_outs,
                       budget_bytes=12 * 1024 * 1024):
    per_col = 2 * (d * in_itemsize + n_outs * 4)   # 2x buffers, f32 outputs
    t = (budget_bytes // per_col) // 128 * 128
    t = max(t, 128)
    return min(t, hw_pad128)


# ----------------------------------------------------------------------------
# Wrapper: PyTorch-convention input x of shape (N, D, H, W), D = maxdisp/divisor.
# If fuse_softmax=True, x is interpreted as raw cost-volume logits and the
# softmax over D is fused into the kernel (saves a full HBM round trip).
# ----------------------------------------------------------------------------
def disparity_regression(x, divisor, ifent=False, fuse_softmax=False,
                         vmem_budget_bytes=12 * 1024 * 1024):
    N, D, H, W = x.shape
    HW = H * W
    xf = x.reshape(N, D, HW)                 # free reshape -> lane-dense layout

    hw128 = ((HW + 127) // 128) * 128        # round HW up to the lane width
    n_outs = 2 if ifent else 1
    T = _pick_spatial_tile(hw128, D, x.dtype.itemsize, n_outs,
                           vmem_budget_bytes)
    # Guarantee >= 2 grid steps when N == 1 so both v7x TensorCores get work.
    if N == 1 and T >= hw128 and hw128 >= 256:
        T = ((((hw128 + 1) // 2) + 127) // 128) * 128
    S = pl.cdiv(hw128, T)
    hw_padded = S * T
    if hw_padded != HW:
        # Single cheap XLA pad keeps the tiled fast path for arbitrary H, W.
        xf = jnp.pad(xf, ((0, 0), (0, 0), (0, hw_padded - HW)))

    grid = (N, S)
    in_spec = pl.BlockSpec((1, D, T), lambda n, s: (n, 0, s))
    out_spec = pl.BlockSpec((1, 1, T), lambda n, s: (n, 0, s))
    cparams = pltpu.CompilerParams(
        dimension_semantics=("parallel", "parallel"))
    kernel = functools.partial(_dispreg_kernel, divisor=float(divisor),
                               fuse_softmax=fuse_softmax)

    if ifent:
        out, ent = pl.pallas_call(
            kernel,
            out_shape=(jax.ShapeDtypeStruct((N, 1, hw_padded), jnp.float32),
                       jax.ShapeDtypeStruct((N, 1, hw_padded), jnp.float32)),
            grid=grid,
            in_specs=[in_spec],
            out_specs=(out_spec, out_spec),
            compiler_params=cparams,
        )(xf)
        return (out[:, 0, :HW].reshape(N, H, W),
                ent[:, 0, :HW].reshape(N, H, W))

    out = pl.pallas_call(
        kernel,
        out_shape=jax.ShapeDtypeStruct((N, 1, hw_padded), jnp.float32),
        grid=grid,
        in_specs=[in_spec],
        out_specs=out_spec,
        compiler_params=cparams,
    )(xf)
    return out[:, 0, :HW].reshape(N, H, W)


# ----------------------------------------------------------------------------
# Pure-JAX reference (mirrors the PyTorch module exactly).
# ----------------------------------------------------------------------------
def _ref_forward(x, divisor, ifent=False):
    N, D, H, W = x.shape
    disp = jnp.arange(D, dtype=jnp.float32).reshape(1, D, 1, 1)
    out = jnp.sum(x * disp, axis=1) * divisor
    if ifent:
        xe = x + 1e-12
        ent = jnp.sum(-xe * jnp.log(xe), axis=1)
        return out, ent
    return out


if __name__ == "__main__":
    # disparityregression(maxdisp=192, divisor=4) -> D = 48 disparity bins.
    N, H, W = 2, 16, 16
    maxdisp, divisor = 192, 4
    D = maxdisp // divisor

    key = jax.random.PRNGKey(0)
    logits = jax.random.normal(key, (N, D, H, W), dtype=jnp.float32)
    # The module is normally fed a softmaxed cost volume over the disparity dim.
    x = jax.nn.softmax(logits, axis=1)

    # 1) ifent=False path (default forward).
    fwd = jax.jit(functools.partial(disparity_regression, divisor=divisor))
    out = jax.block_until_ready(fwd(x))
    ref = _ref_forward(x, divisor)
    np.testing.assert_allclose(np.asarray(out), np.asarray(ref),
                               rtol=1e-5, atol=1e-5)
    assert out.shape == (N, H, W)

    # 2) ifent=True path (returns (out, ent)).
    fwd_ent = jax.jit(functools.partial(disparity_regression, divisor=divisor,
                                        ifent=True))
    out2, ent = jax.block_until_ready(fwd_ent(x))
    ref_out, ref_ent = _ref_forward(x, divisor, ifent=True)
    np.testing.assert_allclose(np.asarray(out2), np.asarray(ref_out),
                               rtol=1e-5, atol=1e-5)
    np.testing.assert_allclose(np.asarray(ent), np.asarray(ref_ent),
                               rtol=1e-4, atol=1e-5)

    # 3) Non-lane-aligned spatial size + N=1 (exercises padding and the forced
    #    >=2 spatial tiles for v7x dual-TC).
    H2, W2 = 9, 30
    logits2 = jax.random.normal(jax.random.PRNGKey(1), (1, D, H2, W2),
                                dtype=jnp.float32)
    x2 = jax.nn.softmax(logits2, axis=1)
    out3, ent3 = jax.block_until_ready(
        jax.jit(functools.partial(disparity_regression, divisor=divisor,
                                  ifent=True))(x2))
    ref3_out, ref3_ent = _ref_forward(x2, divisor, ifent=True)
    np.testing.assert_allclose(np.asarray(out3), np.asarray(ref3_out),
                               rtol=1e-5, atol=1e-5)
    np.testing.assert_allclose(np.asarray(ent3), np.asarray(ref3_ent),
                               rtol=1e-4, atol=1e-5)

    # 4) Fused-softmax path (reads raw logits, softmax over D done in-kernel).
    out4 = jax.block_until_ready(
        jax.jit(functools.partial(disparity_regression, divisor=divisor,
                                  fuse_softmax=True))(logits))
    np.testing.assert_allclose(np.asarray(out4), np.asarray(ref),
                               rtol=1e-5, atol=1e-5)

    # 5) bf16 cost volume (upcast to f32 in-register inside the kernel).
    x_bf16 = x.astype(jnp.bfloat16)
    out5 = jax.block_until_ready(fwd(x_bf16))
    ref5 = _ref_forward(x_bf16.astype(jnp.float32), divisor)
    np.testing.assert_allclose(np.asarray(out5), np.asarray(ref5),
                               rtol=1e-5, atol=1e-5)

    print("KERNEL_OK")
</pallas_src>

<mosaic_0001>
module attributes {stable_mosaic.version = 11 : i64} {
  func.func @_dispreg_kernel(%arg0: i32, %arg1: i32, %arg2: memref<1x48x256xf32, #tpu.memory_space<vmem>>, %arg3: memref<1x1x256xf32, #tpu.memory_space<vmem>>) attributes {dimension_semantics = [#tpu.dimension_semantics<parallel>, #tpu.dimension_semantics<parallel>], iteration_bounds = array<i64: 2, 1>, scalar_prefetch = 0 : i64, scratch_operands = 0 : i64, tpu.core_type = #tpu.core_type<tc>, window_params = [{transform_indices = @transform_0, window_bounds = array<i64: 1, 48, 256>}, {transform_indices = @transform_1, window_bounds = array<i64: 1, 1, 256>}]} {
    %c0 = arith.constant 0 : index
    %c0_0 = arith.constant 0 : index
    %c0_1 = arith.constant 0 : index
    %0 = vector.load %arg2[%c0, %c0_0, %c0_1] : memref<1x48x256xf32, #tpu.memory_space<vmem>>, vector<1x48x256xf32>
    %1 = vector.shape_cast %0 : vector<1x48x256xf32> to vector<48x256xf32>
    %2 = tpu.iota {dimensions = array<i32: 0>} : vector<48x256xi32>
    %3 = arith.sitofp %2 : vector<48x256xi32> to vector<48x256xf32>
    %4 = arith.mulf %1, %3 : vector<48x256xf32>
    %cst = arith.constant dense<0.000000e+00> : vector<256xf32>
    %5 = vector.multi_reduction <add>, %4, %cst [0] : vector<48x256xf32> to vector<256xf32>
    %6 = vector.shape_cast %5 : vector<256xf32> to vector<1x256xf32>
    %cst_2 = arith.constant 4.000000e+00 : f32
    %7 = vector.broadcast %cst_2 : f32 to vector<1x256xf32>
    %8 = arith.mulf %6, %7 : vector<1x256xf32>
    %c0_3 = arith.constant 0 : index
    %c0_4 = arith.constant 0 : index
    %c0_5 = arith.constant 0 : index
    %9 = vector.load %arg3[%c0_3, %c0_4, %c0_5] : memref<1x1x256xf32, #tpu.memory_space<vmem>>, vector<1x1x256xf32>
    %10 = vector.shape_cast %9 : vector<1x1x256xf32> to vector<1x256xf32>
    %11 = vector.shape_cast %8 : vector<1x256xf32> to vector<1x1x256xf32>
    tpu.vector_store %arg3[%c0_3, %c0_4, %c0_5], %11 {strides = array<i32>} : memref<1x1x256xf32, #tpu.memory_space<vmem>>, vector<1x1x256xf32>,
    return
  }
  func.func @transform_0(%arg0: i32, %arg1: i32) -> (i32, i32, i32) {
    %c0_i32 = arith.constant 0 : i32
    %c0_i32_0 = arith.constant 0 : i32
    return %arg0, %c0_i32, %arg1 : i32, i32, i32
  }
  func.func @transform_1(%arg0: i32, %arg1: i32) -> (i32, i32, i32) {
    %c0_i32 = arith.constant 0 : i32
    %c0_i32_0 = arith.constant 0 : i32
    return %arg0, %c0_i32, %arg1 : i32, i32, i32
  }
}

</mosaic_0001>

<llo_original>
// kernel: squeeze.1
$region0: #{squeeze.1}
  %s0 = inlined_call_operand.vmem [shape: f32[2,256], index: 0, kind: input, shape index: {}]
  %s1 = inlined_call_operand.hbm [shape: f32[2,16,16], index: 1, kind: output, shape index: {}]
  $region1: #{squeeze.1} parent=0
    #allocation0 [shape = 'u8[16384]{0}', space=vmem, size = 0x4000, scoped, tag = 'operand span for operand 1']
    #allocation1 [shape = 's32[1]{0}', space=sflag, size = 0x4, scoped, tag = 'scoped memory for squeeze.1']
    #allocation2 [shape = 'u8[8192]{0}', space=vmem, size = 0x2000, scoped, tag = 'scoped mem for input reshape']
    %2 = vsyncpa [#allocation1], 0
    %s4 = sshllo.u32 0, 2
    %s5 = scalar_lea.vmem %s0, 2
    %v6 = vld [vmem:[%s5] sm:%s4]
    %s7 = scalar_lea.vmem [#allocation2], 8
    %8 = vst [vmem:[%s7] sm:%s4] %v6
    %v9 = vld [vmem:[%s0] sm:%s4]
    %10 = vst [vmem:[#allocation2] sm:%s4] %v9
    %v11 = vld [vmem:[#allocation2] sm:$0x3]
    %vm12 = vcmask 130048
    %13 = vst.msk [vmem:[#allocation0] ss:$16 sm:$0x3] %vm12, %v11
    %s14 = scalar_lea.vmem [#allocation2], 8
    %v15 = vld [vmem:[%s14] sm:$0x3]
    %vm16 = vcmask 130048
    %s17 = scalar_lea.vmem [#allocation0], 8
    %18 = vst.msk [vmem:[%s17] ss:$16 sm:$0x3] %vm16, %v15
    %v19 = vld.sshfl [vmem:[#allocation2] sm:$0xff pattern:$0x99999180]
    %20 = vrot.lane.b32.xlu0 %v19, 112
    %v21 = vpop.permute.xlu0 %20
    %vm22 = vcmask 130048
    %s23 = scalar_lea.vmem [#allocation0], 1
    %24 = vst.msk [vmem:[%s23] ss:$8 sm:$0xf] %vm22, %v21
    %v25 = vld.sshfl [vmem:[#allocation2] sm:$0xff pattern:$0x99999180]
    %26 = vrot.lane.b32.xlu0 %v25, 96
    %v27 = vpop.permute.xlu0 %26
    %vm28 = vcmask 130048
    %s29 = scalar_lea.vmem [#allocation0], 2
    %30 = vst.msk [vmem:[%s29] ss:$8 sm:$0xf] %vm28, %v27
    %v31 = vld.sshfl [vmem:[#allocation2] sm:$0xff pattern:$0x99999180]
    %32 = vrot.lane.b32.xlu0 %v31, 80
    %v33 = vpop.permute.xlu0 %32
    %vm34 = vcmask 130048
    %s35 = scalar_lea.vmem [#allocation0], 3
    %36 = vst.msk [vmem:[%s35] ss:$8 sm:$0xf] %vm34, %v33
    %v37 = vld.sshfl [vmem:[#allocation2] sm:$0xff pattern:$0x99999180]
    %38 = vrot.lane.b32.xlu0 %v37, 64
    %v39 = vpop.permute.xlu0 %38
    %vm40 = vcmask 130048
    %s41 = scalar_lea.vmem [#allocation0], 4
    %42 = vst.msk [vmem:[%s41] ss:$8 sm:$0xf] %vm40, %v39
    %v43 = vld.sshfl [vmem:[#allocation2] sm:$0xff pattern:$0x99999180]
    %44 = vrot.lane.b32.xlu0 %v43, 48
    %v45 = vpop.permute.xlu0 %44
    %vm46 = vcmask 130048
    %s47 = scalar_lea.vmem [#allocation0], 5
    %48 = vst.msk [vmem:[%s47] ss:$8 sm:$0xf] %vm46, %v45
    %v49 = vld.sshfl [vmem:[#allocation2] sm:$0xff pattern:$0x99999180]
    %50 = vrot.lane.b32.xlu0 %v49, 32
    %v51 = vpop.permute.xlu0 %50
    %vm52 = vcmask 130048
    %s53 = scalar_lea.vmem [#allocation0], 6
    %54 = vst.msk [vmem:[%s53] ss:$8 sm:$0xf] %vm52, %v51
    %v55 = vld.sshfl [vmem:[#allocation2] sm:$0xff pattern:$0x99999180]
    %56 = vrot.lane.b32.xlu0 %v55, 16
    %v57 = vpop.permute.xlu0 %56
    %vm58 = vcmask 130048
    %s59 = scalar_lea.vmem [#allocation0], 7
    %60 = vst.msk [vmem:[%s59] ss:$8 sm:$0xf] %vm58, %v57
    %s62 = ssub.s32 512, 512
    %63 = vsyncadd [#allocation1], %s62
    %s65 = sshll.u32 [#allocation0], 4
    %s66 = int_to_ptr.vmem [resolvable:$true] %s65
    %68 = dma.vmem_to_hbm [thread:$0]  %s66, 512, %s1, [#allocation1]
    %69 = dma.done [#allocation1], 512
    %70 = vsyncpa [#allocation1], 1

// kernel: disparity_regression.1
$region0: #{disparity_regression.1}
  #allocation0 [shape = 'u32[]', space=smem, size = 0x4, offset = 0x4, fixed_abs, tag = 'smem constant byte address 0x4 - core index']
  #allocation1 [shape = 'u32[144,128]{1,0:T(1,128)}', space=vmem, size = 0x12000, scoped, tag = 'internal scratch']
  %s0 = inlined_call_operand.vmem [shape: f32[2,48,256], index: 0, kind: input, shape index: {}]
  %s1 = inlined_call_operand.vmem [shape: f32[2,1,256], index: 1, kind: output, shape index: {}]
  %s2 = sld [smem:[#allocation0]]
  $region37: #{disparity_regression.1} parent=0
    _
  %s4 = ssub.s32 1, %s2
  %s5 = scalar_select 0, %s4, %s2
  loop: start=0, step=1, limit=4
  $region2: #{disparity_regression.1} parent=0 // loop_pre_header
    _
  $region3: #{disparity_regression.1} parent=0 // loop_header
    %s7 = sphi 0, %s11
    %p8 = scmp.ge.s32.totalorder %s7, 4
    %s14 = sphi 0, %s26
    %s15 = sphi 0, %s22
    %s16 = sphi 0, %s14
    %s17 = sphi 0, %s15
    %s18 = sphi 0, %s16
    %s19 = sphi 0, %s17
    %s31 = sphi 0, %s33
    %s34 = sphi 0, %s31
    %s35 = sphi 0, %s34
    %s51 = sphi 0, %s35
    %s59 = sphi 0, %s61
    %s62 = sphi 0, %s59
    %s63 = sphi 0, %s62
    %s79 = sphi 0, %s63
  $region4: #{disparity_regression.1} parent=0 // loop_header_branch
    %10 = sbr.rel (%p8) target = $region8
  $region5: #{disparity_regression.1} parent=0 // loop_body
    %s12 = ssub.s32 %s7, 1
    %s13 = ssub.s32 %s7, 2
    %s20 = sadd.s32 1, %s15
    %p21 = scmp.ge.s32.totalorder %s20, 1
    %s22 = scalar_select %p21, 0, %s20
    %s23 = sadd.s32 1, %s14
    %s24 = scalar_select %p21, %s23, %s14
    %p25 = scmp.ge.s32.totalorder %s24, 2
    %s26 = scalar_select %p25, 0, %s24
    %s27 = ssub.s32 %s14, %s26
    %s28 = ssub.s32 %s15, %s22
    %s29 = sor.u32 %s27, %s28
    %p30 = scmp.eq.s32.totalorder %s29, 0
    %s32 = sadd.s32 %s31, 1
    %s33 = scalar_select %p30, %s31, %s32
    %p36 = pneg %p30
    %p37 = scmp.eq.s32.totalorder %s7, 1
    %p38 = por %p36, %p37
    %p39 = scmp.ne.s32.totalorder %s31, %s34
    %p40 = scmp.eq.s32.totalorder %s7, 0
    %p41 = por %p39, %p40
    %p42 = scmp.ne.s32.totalorder %s31, %s34
    %p43 = scmp.eq.s32.totalorder %s12, 1
    %p44 = por %p42, %p43
    %p45 = scmp.ne.s32.totalorder %s34, %s35
    %p46 = scmp.eq.s32.totalorder %s12, 0
    %p47 = por %p45, %p46
    %p48 = scmp.ne.s32.totalorder %s34, %s35
    %p49 = scmp.eq.s32.totalorder %s13, 1
    %p50 = por %p48, %p49
    %p52 = scmp.ne.s32.totalorder %s35, %s51
    %p53 = scmp.eq.s32.totalorder %s13, 0
    %p54 = por %p52, %p53
    %s55 = ssub.s32 %s14, %s26
    %s56 = ssub.s32 %s15, %s22
    %s57 = sor.u32 %s55, %s56
    %p58 = scmp.eq.s32.totalorder %s57, 0
    %s60 = sadd.s32 %s59, 1
    %s61 = scalar_select %p58, %s59, %s60
    %p64 = pneg %p58
    %p65 = scmp.eq.s32.totalorder %s7, 1
    %p66 = por %p64, %p65
    %p67 = scmp.ne.s32.totalorder %s59, %s62
    %p68 = scmp.eq.s32.totalorder %s7, 0
    %p69 = por %p67, %p68
    %p70 = scmp.ne.s32.totalorder %s59, %s62
    %p71 = scmp.eq.s32.totalorder %s12, 1
    %p72 = por %p70, %p71
    %p73 = scmp.ne.s32.totalorder %s62, %s63
    %p74 = scmp.eq.s32.totalorder %s12, 0
    %p75 = por %p73, %p74
    %p76 = scmp.ne.s32.totalorder %s62, %s63
    %p77 = scmp.eq.s32.totalorder %s13, 1
    %p78 = por %p76, %p77
    %p80 = scmp.ne.s32.totalorder %s63, %s79
    %p81 = scmp.eq.s32.totalorder %s13, 0
    %p82 = por %p80, %p81
    %p83 = scmp.le.s32.totalorder 1, %s7
    %p84 = scmp.lt.s32.totalorder %s7, 3
    %p85 = pnand %p83, %p84
    %p86 = pneg %p85
    // Predicated region
    $region9: #{disparity_regression.1} parent=5 // pred_check
      _
    $region10: #{disparity_regression.1} parent=5 // pred_check_branch
      %88 = sbr.rel (%p85) target = $region12
    $region11: #{disparity_regression.1} parent=5 // pred_region
      %s89 = ssub.s32 %s7, 1
    $region12: #{disparity_regression.1} parent=5 // pred_fallthru
      _
    %p90 = scmp.lt.s32.totalorder %s7, 2
    // Predicated region
    $region13: #{disparity_regression.1} parent=5 // pred_check
      %p91 = pneg %p90
    $region14: #{disparity_regression.1} parent=5 // pred_check_branch
      %93 = sbr.rel (%p91) target = $region16
    $region15: #{disparity_regression.1} parent=5 // pred_region
      // Predicated region
      $region17: #{disparity_regression.1} parent=15 // pred_check
        %p94 = pneg %p41
      $region18: #{disparity_regression.1} parent=15 // pred_check_branch
        %96 = sbr.rel (%p94) target = $region20
      $region19: #{disparity_regression.1} parent=15 // pred_region
        %s97 = smul.u32 2, %s15
        %p98 = scmp.lt.s32.totalorder %s14, 1
        %s99 = scalar_select %p98, %s14, 1
        %p100 = scmp.lt.s32.totalorder %s97, 1
        %s101 = scalar_select %p100, %s97, 1
        %s102 = smul.addr %s99, 12
        %s103 = sadd.s32 %s101, %s102
        %s104 = smul.addr %s103, 8
        %s105 = scalar_lea.vmem %s0, %s104
        %s106 = smul.u32 2, %s15
      $region20: #{disparity_regression.1} parent=15 // pred_fallthru
        _
    $region16: #{disparity_regression.1} parent=5 // pred_fallthru
      _
    %p107 = scmp.le.s32.totalorder 1, %s7
    %p108 = scmp.lt.s32.totalorder %s7, 3
    %p109 = pnand %p107, %p108
    %p110 = pneg %p109
    // Predicated region
    $region21: #{disparity_regression.1} parent=5 // pred_check
      _
    $region22: #{disparity_regression.1} parent=5 // pred_check_branch
      %112 = sbr.rel (%p109) target = $region24
    $region23: #{disparity_regression.1} parent=5 // pred_region
      %s113 = ssub.s32 %s7, 1
      %s114 = smul.u32 2, %s17
      %p115 = scmp.lt.s32.totalorder %s16, 1
      %s116 = scalar_select %p115, %s16, 1
      %p117 = scmp.lt.s32.totalorder %s114, 1
      %s118 = scalar_select %p117, %s114, 1
      %s119 = smul.addr %s116, 12
      %s120 = sadd.s32 %s118, %s119
      %s121 = smul.addr %s120, 8
      %s122 = scalar_lea.vmem %s0, %s121
      %p123 = pneg %p47
      %p124 = pneg %p44
      %p125 = pneg %p75
      %p126 = pneg %p72
      %s127 = smul.u32 2, %s17
      %p128 = scmp.lt.s32.totalorder %s16, 1
      %s129 = scalar_select %p128, %s16, 1
      %p130 = scmp.lt.s32.totalorder %s127, 1
      %s131 = scalar_select %p130, %s127, 1
      %s132 = smul.addr %s129, 2
      %s133 = sadd.s32 %s131, %s132
      %s134 = scalar_lea.vmem %s1, %s133
      %s135 = smul.u32 2, %s17
      %p136 = scmp.lt.s32.totalorder %s16, 1
      %s137 = scalar_select %p136, %s16, 1
      %p138 = scmp.lt.s32.totalorder %s135, 1
      %s139 = scalar_select %p138, %s135, 1
      %s140 = smul.addr %s137, 12
      %s141 = sadd.s32 %s139, %s140
      %s142 = smul.addr %s141, 8
      %s143 = scalar_lea.vmem %s0, %s142
      %s144 = smul.u32 2, %s17
      %s145 = smul.u32 2, %s17
      %p146 = scmp.lt.s32.totalorder %s16, 1
      %s147 = scalar_select %p146, %s16, 1
      %p148 = scmp.lt.s32.totalorder %s145, 1
      %s149 = scalar_select %p148, %s145, 1
      %s150 = smul.addr %s147, 2
      %s151 = sadd.s32 %s149, %s150
      %s152 = scalar_lea.vmem %s1, %s151
      %s153 = smul.u32 2, %s17
      %v154 = vld [vmem:[%s143] sm:$0xff]
      %v155 = vld [vmem:[%s143 + $0x8] sm:$0xff]
      %v156 = vld [vmem:[%s143 + $0x10] sm:$0xff]
      %v157 = vld [vmem:[%s143 + $0x18] sm:$0xff]
      %v158 = vld [vmem:[%s143 + $0x20] sm:$0xff]
      %v159 = vld [vmem:[%s143 + $0x28] sm:$0xff]
      %v160 = vld [vmem:[%s143 + $0x30] sm:$0xff]
      %v161 = vld [vmem:[%s143 + $0x38] sm:$0xff]
      %v162 = vld [vmem:[%s143 + $0x40] sm:$0xff]
      %v163 = vld [vmem:[%s143 + $0x48] sm:$0xff]
      %v164 = vld [vmem:[%s143 + $0x50] sm:$0xff]
      %v165 = vld [vmem:[%s143 + $0x58] sm:$0xff]
      %v166 = vlaneseq
      %v167 = vshrl.u32 %v166, 7
      %v168 = vadd.s32 %v167, 8
      %v169 = vadd.s32 %v167, 16
      %v170 = vadd.s32 %v167, 24
      %v171 = vadd.s32 %v167, 32
      %v172 = vadd.s32 %v167, 40
      %v173 = vcvt.s32.f32 %v167
      %v174 = vcvt.s32.f32 %v168
      %v175 = vcvt.s32.f32 %v169
      %v176 = vcvt.s32.f32 %v170
      %v177 = vcvt.s32.f32 %v171
      %v178 = vcvt.s32.f32 %v172
      %v179 = vmul.f32 %v154, %v173
      %v180 = vmul.f32 %v155, %v173
      %v181 = vmul.f32 %v156, %v174
      %v182 = vmul.f32 %v157, %v174
      %v183 = vmul.f32 %v158, %v175
      %v184 = vmul.f32 %v159, %v175
      %v185 = vmul.f32 %v160, %v176
      %v186 = vmul.f32 %v161, %v176
      %v187 = vmul.f32 %v162, %v177
      %v188 = vmul.f32 %v163, %v177
      %v189 = vmul.f32 %v164, %v178
      %v190 = vmul.f32 %v165, %v178
      %v191 = vadd.f32 %v179, %v181
      %v192 = vadd.f32 %v191, %v183
      %v193 = vadd.f32 %v192, %v185
      %v194 = vadd.f32 %v193, %v187
      %v195 = vadd.f32 %v194, %v189
      %v196 = vrot.slane %v195, 4
      %v197 = vadd.f32 %v195, %v196
      %v198 = vrot.slane %v197, 2
      %v199 = vadd.f32 %v197, %v198
      %v200 = vrot.slane %v199, 1
      %v201 = vadd.f32 %v199, %v200
      %v202 = vadd.f32 %v180, %v182
      %v203 = vadd.f32 %v202, %v184
      %v204 = vadd.f32 %v203, %v186
      %v205 = vadd.f32 %v204, %v188
      %v206 = vadd.f32 %v205, %v190
      %v207 = vrot.slane %v206, 4
      %v208 = vadd.f32 %v206, %v207
      %v209 = vrot.slane %v208, 2
      %v210 = vadd.f32 %v208, %v209
      %v211 = vrot.slane %v210, 1
      %v212 = vadd.f32 %v210, %v211
      %v213 = vmul.f32 %v201, 4.0
      %v214 = vmul.f32 %v212, 4.0
      %v217 = vcombine.low %v213, %v214
      %v219 = vunpack.c.l.s4 1966171168
      %v220 = vunpack.c.0.s8 %v219
      %v221 = vlaneseq
      %v222 = vshrl.u32 %v221, 7
      %v223 = vsub.s32 %v220, %v222
      %v224 = vrot.slane %v217, %v223
      %v226 = vunpack.c.l.s4 1966171168
      %v227 = vunpack.c.0.s8 %v226
      %v228 = vlaneseq
      %v229 = vshrl.u32 %v228, 7
      %v230 = vsub.s32 %v227, %v229
      %v231 = vrot.slane %v224, %v230
      %v233 = vlaneseq
      %vm234 = vcmp.ge.s32.totalorder %v233, 0
      %vm235 = vcmp.lt.s32.totalorder %v233, 256
      %vm236 = vmand %vm234, %vm235
      %237 = vst.msk [vmem:[%s152] sm:$0x3] %vm236, %v231
      %s238 = smul.u32 2, %s17
      %p239 = scmp.lt.s32.totalorder %s16, 1
      %s240 = scalar_select %p239, %s16, 1
      %p241 = scmp.lt.s32.totalorder %s238, 1
      %s242 = scalar_select %p241, %s238, 1
      %s243 = smul.addr %s240, 2
      %s244 = sadd.s32 %s242, %s243
      %s245 = scalar_lea.vmem %s1, %s244
      // Predicated region
      $region25: #{disparity_regression.1} parent=23 // pred_check
        %p246 = pneg %p72
      $region26: #{disparity_regression.1} parent=23 // pred_check_branch
        %248 = sbr.rel (%p246) target = $region28
      $region27: #{disparity_regression.1} parent=23 // pred_region
        %s249 = smul.u32 2, %s17
      $region28: #{disparity_regression.1} parent=23 // pred_fallthru
        _
    $region24: #{disparity_regression.1} parent=5 // pred_fallthru
      _
    %p250 = scmp.le.s32.totalorder 2, %s7
    // Predicated region
    $region29: #{disparity_regression.1} parent=5 // pred_check
      %p251 = pneg %p250
    $region30: #{disparity_regression.1} parent=5 // pred_check_branch
      %253 = sbr.rel (%p251) target = $region32
    $region31: #{disparity_regression.1} parent=5 // pred_region
      %s254 = ssub.s32 %s7, 2
      // Predicated region
      $region33: #{disparity_regression.1} parent=31 // pred_check
        %p255 = pneg %p78
      $region34: #{disparity_regression.1} parent=31 // pred_check_branch
        %257 = sbr.rel (%p255) target = $region36
      $region35: #{disparity_regression.1} parent=31 // pred_region
        %s258 = smul.u32 2, %s19
        %p259 = scmp.lt.s32.totalorder %s18, 1
        %s260 = scalar_select %p259, %s18, 1
        %p261 = scmp.lt.s32.totalorder %s258, 1
        %s262 = scalar_select %p261, %s258, 1
        %s263 = smul.addr %s260, 2
        %s264 = sadd.s32 %s262, %s263
        %s265 = scalar_lea.vmem %s1, %s264
      $region36: #{disparity_regression.1} parent=31 // pred_fallthru
        _
    $region32: #{disparity_regression.1} parent=5 // pred_fallthru
      _
  $region6: #{disparity_regression.1} parent=0 // loop_footer
    %s11 = sadd.s32 1, %s7
  $region7: #{disparity_regression.1} parent=0 // loop_footer_branch
    %6 = sbr.rel target = $region3
  $region8: #{disparity_regression.1} parent=0 // loop_exit
    _

</llo_original>
